<compile_context>
chip_gen: v6e
topology: v6e:2x2x1
jax: 0.10.0
libtpu: 0.0.40
codegen_flags: <defaults>
</compile_context>

<pallas_src>
import functools

import jax
import jax.numpy as jnp
from jax.experimental import pallas as pl
from jax.experimental.pallas import tpu as pltpu


def _vn_linear_kernel(x_ref, w_ref, b_ref, o_ref, *, mxu_dtype):
    # x_ref: [TM, g*K] (input dtype)   w_ref: [g*K, g*Cn] (mxu dtype, resident)
    # b_ref: [1, g*Cn] (f32, resident) o_ref: [TM, g*Cn]  (output dtype)
    x = x_ref[...]
    if mxu_dtype is not None:
        x = x.astype(mxu_dtype)  # VPU cast on the resident tile; hidden under DMA
    acc = jnp.dot(x, w_ref[...], preferred_element_type=jnp.float32)
    o_ref[...] = (acc + b_ref[...]).astype(o_ref.dtype)


def _round_up(v, m):
    return (v + m - 1) // m * m


def vn_linear(x, weight, bias, *, mxu_dtype=jnp.bfloat16, out_dtype=None,
              stream_budget_bytes=16 * 1024 * 1024):
    """VNLinear forward.

    x:      [B, N, C_in, 3]
    weight: [C_out, C_in]   (nn.Linear weight)
    bias:   [C_out]
    returns [B, N, C_out, 3]
    """
    B, N, C_in, D = x.shape
    C_out = weight.shape[0]
    M = B * N
    K = C_in * D
    Cn = C_out * D
    if out_dtype is None:
        out_dtype = x.dtype

    # Largest lane-packing factor that divides M (avoids any padding copy).
    g = next(gg for gg in (16, 8, 4, 2, 1) if M % gg == 0)
    Mg = M // g

    # Free row-major reshape: [B, N, C_in, 3] -> [M, K] -> [Mg, g*K].
    x_g = x.reshape(Mg, g * K)

    # Parameter-sized prep (done once, negligible):
    #   y2d[., o*3+e] = sum_{i,d} x2d[., i*3+d] * kron(W^T, I3)[i*3+d, o*3+e]
    w_dtype = mxu_dtype if mxu_dtype is not None else weight.dtype
    eye3 = jnp.eye(D, dtype=weight.dtype)
    w_k = jnp.kron(weight.T, eye3)                                    # [K, Cn]
    w_g = jnp.kron(jnp.eye(g, dtype=weight.dtype), w_k).astype(w_dtype)  # [g*K, g*Cn]
    b_g = jnp.tile(jnp.repeat(bias, D), g).reshape(1, g * Cn).astype(jnp.float32)

    # --- Tile the packed-row axis.  Size tiles from a VMEM budget for the two
    # streamed (double-buffered) arrays so each grid step moves several MiB,
    # well above the ~0.35 us fixed per-step pipeline overhead. ---
    lanes_x = _round_up(g * K, 128)
    lanes_o = _round_up(g * Cn, 128)
    bytes_per_row = (lanes_x * x.dtype.itemsize
                     + lanes_o * jnp.dtype(out_dtype).itemsize)
    tm = max(8, (stream_budget_bytes // (2 * bytes_per_row)) // 8 * 8)
    tm = min(tm, _round_up(Mg, 8))
    # Keep >= ~8 grid steps on large problems so megacore (v7x) has work for
    # both TensorCores, but never shrink a step below ~256 packed rows.
    steps = -(-Mg // tm)
    if steps < 8:
        tm_alt = _round_up(-(-Mg // 8), 8)
        if tm_alt >= 256:
            tm = min(tm, tm_alt)
    grid = (pl.cdiv(Mg, tm),)

    kernel = functools.partial(_vn_linear_kernel, mxu_dtype=mxu_dtype)
    out_g = pl.pallas_call(
        kernel,
        out_shape=jax.ShapeDtypeStruct((Mg, g * Cn), out_dtype),
        grid=grid,
        in_specs=[
            pl.BlockSpec((tm, g * K), lambda i: (i, 0)),       # streamed x tiles
            pl.BlockSpec((g * K, g * Cn), lambda i: (0, 0)),   # VMEM-resident weight
            pl.BlockSpec((1, g * Cn), lambda i: (0, 0)),       # VMEM-resident bias
        ],
        out_specs=pl.BlockSpec((tm, g * Cn), lambda i: (i, 0)),
        compiler_params=pltpu.CompilerParams(
            dimension_semantics=("parallel",),      # independent row tiles
            vmem_limit_bytes=48 * 1024 * 1024,      # explicit; safe on v7x (64 MiB)
        ),
    )(x_g, w_g, b_g)

    # Free row-major reshape back to [B, N, C_out, 3].
    return out_g.reshape(B, N, C_out, D)


if __name__ == "__main__":
    # Small shapes consistent with the module's forward: x: [B, N_samples, C_in, 3].
    B, Ns, C_in, C_out = 2, 64, 8, 16

    key = jax.random.PRNGKey(0)
    kx, kw, kb = jax.random.split(key, 3)

    x = jax.random.normal(kx, (B, Ns, C_in, 3), dtype=jnp.float32)
    # nn.Linear(in_channels, out_channels) init range.
    bound = 1.0 / (C_in ** 0.5)
    weight = jax.random.uniform(kw, (C_out, C_in), jnp.float32, -bound, bound)
    bias = jax.random.uniform(kb, (C_out,), jnp.float32, -bound, bound)

    y = jax.block_until_ready(jax.jit(vn_linear)(x, weight, bias))
    assert y.shape == (B, Ns, C_out, 3), y.shape

    # fp32 reference of the module semantics (loose tol: kernel uses bf16 MXU inputs).
    y_f32 = jnp.einsum("bnid,oi->bnod", x, weight,
                       precision=jax.lax.Precision.HIGHEST) + bias[None, None, :, None]
    assert jnp.allclose(y, y_f32, atol=3e-2, rtol=3e-2)

    # Tight check against a reference with the same bf16 input rounding.
    xb = x.astype(jnp.bfloat16).astype(jnp.float32)
    wb = weight.astype(jnp.bfloat16).astype(jnp.float32)
    y_bf = jnp.einsum("bnid,oi->bnod", xb, wb,
                      precision=jax.lax.Precision.HIGHEST) + bias[None, None, :, None]
    assert jnp.allclose(y, y_bf, atol=1e-4, rtol=1e-4)

    # Non-multiple-of-16 row count exercises the adaptive lane-packing fallback
    # (M = 18 -> g = 2) and the masked partial tail block.
    x2 = jax.random.normal(kx, (2, 9, C_in, 3), dtype=jnp.float32)
    y2 = jax.block_until_ready(jax.jit(vn_linear)(x2, weight, bias))
    y2_ref = jnp.einsum("bnid,oi->bnod", x2, weight,
                        precision=jax.lax.Precision.HIGHEST) + bias[None, None, :, None]
    assert y2.shape == (2, 9, C_out, 3), y2.shape
    assert jnp.allclose(y2, y2_ref, atol=3e-2, rtol=3e-2)

    print("KERNEL_OK")
</pallas_src>

<mosaic_0001>
module attributes {stable_mosaic.version = 11 : i64} {
  func.func @_vn_linear_kernel(%arg0: i32, %arg1: memref<8x384xf32, #tpu.memory_space<vmem>>, %arg2: memref<384x768xbf16, #tpu.memory_space<vmem>>, %arg3: memref<1x768xf32, #tpu.memory_space<vmem>>, %arg4: memref<8x768xf32, #tpu.memory_space<vmem>>) attributes {dimension_semantics = [#tpu.dimension_semantics<parallel>], iteration_bounds = array<i64: 1>, scalar_prefetch = 0 : i64, scratch_operands = 0 : i64, tpu.core_type = #tpu.core_type<tc>, window_params = [{transform_indices = @transform_0, window_bounds = array<i64: 8, 384>}, {pipeline_mode = #tpu.pipeline_mode<synchronous>, transform_indices = @transform_1, window_bounds = array<i64: 384, 768>}, {pipeline_mode = #tpu.pipeline_mode<synchronous>, transform_indices = @transform_2, window_bounds = array<i64: 1, 768>}, {transform_indices = @transform_3, window_bounds = array<i64: 8, 768>}]} {
    %c0 = arith.constant 0 : index
    %c0_0 = arith.constant 0 : index
    %0 = vector.load %arg1[%c0, %c0_0] : memref<8x384xf32, #tpu.memory_space<vmem>>, vector<8x384xf32>
    %1 = arith.truncf %0 : vector<8x384xf32> to vector<8x384xbf16>
    %c0_1 = arith.constant 0 : index
    %c0_2 = arith.constant 0 : index
    %2 = vector.load %arg2[%c0_1, %c0_2] : memref<384x768xbf16, #tpu.memory_space<vmem>>, vector<384x768xbf16>
    %cst = arith.constant dense<0.000000e+00> : vector<8x768xf32>
    %3 = tpu.matmul %1, %2, %cst {dimension_numbers = #tpu.dot_dimension_numbers<[1], [0], [0], [1], [0, 0, 1, 1], [], []>} : vector<8x384xbf16>, vector<384x768xbf16>, vector<8x768xf32> -> vector<8x768xf32>
    %c0_3 = arith.constant 0 : index
    %c0_4 = arith.constant 0 : index
    %4 = vector.load %arg3[%c0_3, %c0_4] : memref<1x768xf32, #tpu.memory_space<vmem>>, vector<1x768xf32>
    %5 = vector.broadcast %4 : vector<1x768xf32> to vector<8x768xf32>
    %6 = arith.addf %3, %5 : vector<8x768xf32>
    %c0_5 = arith.constant 0 : index
    %c0_6 = arith.constant 0 : index
    %7 = vector.load %arg4[%c0_5, %c0_6] : memref<8x768xf32, #tpu.memory_space<vmem>>, vector<8x768xf32>
    tpu.vector_store %arg4[%c0_5, %c0_6], %6 {strides = array<i32>} : memref<8x768xf32, #tpu.memory_space<vmem>>, vector<8x768xf32>,
    return
  }
  func.func @transform_0(%arg0: i32) -> (i32, i32) {
    %c0_i32 = arith.constant 0 : i32
    %c0_i32_0 = arith.constant 0 : i32
    return %arg0, %c0_i32 : i32, i32
  }
  func.func @transform_1(%arg0: i32) -> (i32, i32) {
    %c0_i32 = arith.constant 0 : i32
    %c0_i32_0 = arith.constant 0 : i32
    %c0_i32_1 = arith.constant 0 : i32
    return %c0_i32, %c0_i32_0 : i32, i32
  }
  func.func @transform_2(%arg0: i32) -> (i32, i32) {
    %c0_i32 = arith.constant 0 : i32
    %c0_i32_0 = arith.constant 0 : i32
    %c0_i32_1 = arith.constant 0 : i32
    return %c0_i32, %c0_i32_0 : i32, i32
  }
  func.func @transform_3(%arg0: i32) -> (i32, i32) {
    %c0_i32 = arith.constant 0 : i32
    %c0_i32_0 = arith.constant 0 : i32
    return %arg0, %c0_i32 : i32, i32
  }
}

</mosaic_0001>

<llo_original>
// kernel: tile.5
$region0: #{tile.5}
  %s0 = inlined_call_operand.vmem [shape: f32[16,3], index: 0, kind: input, shape index: {}]
  %s1 = inlined_call_operand.vmem [shape: f32[48], index: 1, kind: output, shape index: {}]
  $region1: #{tile.5} parent=0
    #allocation0 [shape = 'u8[4096]{0}', space=vmem, size = 0x1000, scoped, tag = 'scoped mem for output reshape']
    %v2 = vld [vmem:[%s0] sm:$0x1]
    %vm3 = vcmask 23552
    %4 = vst.msk [vmem:[#allocation0] sm:$0x1] %vm3, %v2
    %s5 = scalar_lea.vmem %s0, 15
    %v6 = vld [vmem:[%s5] sm:$0x1]
    %7 = vrot.lane.b32.xlu0 %v6, 45
    %v8 = vpop.permute.xlu0 %7
    %vm9 = vcmask 392552
    %10 = vst.msk [vmem:[#allocation0] sm:$0x1] %vm9, %v8
    %s11 = scalar_lea.vmem %s0, 14
    %v12 = vld [vmem:[%s11] sm:$0x1]
    %13 = vrot.lane.b32.xlu0 %v12, 42
    %v14 = vpop.permute.xlu0 %13
    %vm15 = vcmask 367952
    %16 = vst.msk [vmem:[#allocation0] sm:$0x1] %vm15, %v14
    %s17 = scalar_lea.vmem %s0, 13
    %v18 = vld [vmem:[%s17] sm:$0x1]
    %19 = vrot.lane.b32.xlu0 %v18, 39
    %v20 = vpop.permute.xlu0 %19
    %vm21 = vcmask 343352
    %22 = vst.msk [vmem:[#allocation0] sm:$0x1] %vm21, %v20
    %s23 = scalar_lea.vmem %s0, 12
    %v24 = vld [vmem:[%s23] sm:$0x1]
    %25 = vrot.lane.b32.xlu0 %v24, 36
    %v26 = vpop.permute.xlu0 %25
    %vm27 = vcmask 318752
    %28 = vst.msk [vmem:[#allocation0] sm:$0x1] %vm27, %v26
    %s29 = scalar_lea.vmem %s0, 11
    %v30 = vld [vmem:[%s29] sm:$0x1]
    %31 = vrot.lane.b32.xlu0 %v30, 33
    %v32 = vpop.permute.xlu0 %31
    %vm33 = vcmask 294152
    %34 = vst.msk [vmem:[#allocation0] sm:$0x1] %vm33, %v32
    %s35 = scalar_lea.vmem %s0, 10
    %v36 = vld [vmem:[%s35] sm:$0x1]
    %37 = vrot.lane.b32.xlu0 %v36, 30
    %v38 = vpop.permute.xlu0 %37
    %vm39 = vcmask 269552
    %40 = vst.msk [vmem:[#allocation0] sm:$0x1] %vm39, %v38
    %s41 = scalar_lea.vmem %s0, 9
    %v42 = vld [vmem:[%s41] sm:$0x1]
    %43 = vrot.lane.b32.xlu0 %v42, 27
    %v44 = vpop.permute.xlu0 %43
    %vm45 = vcmask 244952
    %46 = vst.msk [vmem:[#allocation0] sm:$0x1] %vm45, %v44
    %s47 = scalar_lea.vmem %s0, 8
    %v48 = vld [vmem:[%s47] sm:$0x1]
    %49 = vrot.lane.b32.xlu0 %v48, 24
    %v50 = vpop.permute.xlu0 %49
    %vm51 = vcmask 220352
    %52 = vst.msk [vmem:[#allocation0] sm:$0x1] %vm51, %v50
    %s53 = scalar_lea.vmem %s0, 7
    %v54 = vld [vmem:[%s53] sm:$0x1]
    %55 = vrot.lane.b32.xlu0 %v54, 21
    %v56 = vpop.permute.xlu0 %55
    %vm57 = vcmask 195752
    %58 = vst.msk [vmem:[#allocation0] sm:$0x1] %vm57, %v56
    %s59 = scalar_lea.vmem %s0, 6
    %v60 = vld [vmem:[%s59] sm:$0x1]
    %61 = vrot.lane.b32.xlu0 %v60, 18
    %v62 = vpop.permute.xlu0 %61
    %vm63 = vcmask 171152
    %64 = vst.msk [vmem:[#allocation0] sm:$0x1] %vm63, %v62
    %s65 = scalar_lea.vmem %s0, 5
    %v66 = vld [vmem:[%s65] sm:$0x1]
    %67 = vrot.lane.b32.xlu0 %v66, 15
    %v68 = vpop.permute.xlu0 %67
    %vm69 = vcmask 146552
    %70 = vst.msk [vmem:[#allocation0] sm:$0x1] %vm69, %v68
    %s71 = scalar_lea.vmem %s0, 4
    %v72 = vld [vmem:[%s71] sm:$0x1]
    %73 = vrot.lane.b32.xlu0 %v72, 12
    %v74 = vpop.permute.xlu0 %73
    %vm75 = vcmask 121952
    %76 = vst.msk [vmem:[#allocation0] sm:$0x1] %vm75, %v74
    %s77 = scalar_lea.vmem %s0, 3
    %v78 = vld [vmem:[%s77] sm:$0x1]
    %79 = vrot.lane.b32.xlu0 %v78, 9
    %v80 = vpop.permute.xlu0 %79
    %vm81 = vcmask 97352
    %82 = vst.msk [vmem:[#allocation0] sm:$0x1] %vm81, %v80
    %s83 = scalar_lea.vmem %s0, 2
    %v84 = vld [vmem:[%s83] sm:$0x1]
    %85 = vrot.lane.b32.xlu0 %v84, 6
    %v86 = vpop.permute.xlu0 %85
    %vm87 = vcmask 72752
    %88 = vst.msk [vmem:[#allocation0] sm:$0x1] %vm87, %v86
    %s89 = scalar_lea.vmem %s0, 1
    %v90 = vld [vmem:[%s89] sm:$0x1]
    %91 = vrot.lane.b32.xlu0 %v90, 3
    %v92 = vpop.permute.xlu0 %91
    %vm93 = vcmask 48152
    %94 = vst.msk [vmem:[#allocation0] sm:$0x1] %vm93, %v92
    %s96 = sshll.u32 1, 1
    %s97 = ssub.s32 %s96, 1
    %v99 = vld [vmem:[#allocation0] sm:%s97]
    %s100 = sshll.u32 1, 1
    %s101 = ssub.s32 %s100, 1
    %102 = vst [vmem:[%s1] sm:%s101] %v99

// kernel: tile.6
$region0: #{tile.6}
  #allocation0 [shape = 's32[1]{0}', space=sflag, size = 0x4, scoped, tag = 'scoped memory for tile.6']
  %s0 = inlined_call_operand.vmem [shape: f32[48], index: 0, kind: input, shape index: {}]
  %s1 = inlined_call_operand.vmem [shape: f32[16,48], index: 1, kind: output, shape index: {}]
  // Predicated region
  $region2: #{tile.6} parent=0 // pred_check
    _
  $region3: #{tile.6} parent=0 // pred_check_branch
    %3 = sbr.rel (0) target = $region5
  $region4: #{tile.6} parent=0 // pred_region
    _
  $region5: #{tile.6} parent=0 // pred_fallthru
    _
  %v4 = vld [vmem:[%s0] ss:$0 sm:$0xff]
  %5 = vst [vmem:[%s1] sm:$0xff] %v4
  %s6 = scalar_lea.vmem %s1, 8
  %7 = vst [vmem:[%s6] sm:$0xff] %v4

// kernel: tile.7
$region0: #{tile.7}
  %s0 = inlined_call_operand.vmem [shape: f32[16,48], index: 0, kind: input, shape index: {}]
  %s1 = inlined_call_operand.vmem [shape: f32[1,768], index: 1, kind: output, shape index: {}]
  $region1: #{tile.7} parent=0
    #allocation0 [shape = 'u8[24576]{0}', space=vmem, size = 0x6000, scoped, tag = 'scoped mem for output reshape']
    %s2 = smov 3
    %v3 = vld [vmem:[%s0] ss:$8 sm:%s2]
    %vm4 = vcmask 392192
    %5 = vst.msk [vmem:[#allocation0] ss:$24 sm:$0x3] %vm4, %v3
    %s6 = scalar_lea.vmem %s0, 13
    %s7 = smov 3
    %v8 = vld [vmem:[%s6] ss:$-8 sm:%s7]
    %s9 = scalar_lea.vmem %s0, 13
    %s10 = smov 3
    %v11 = vld [vmem:[%s9] ss:$-8 sm:%s10]
    %vm12 = vcmask 130048
    %v13 = vsel %vm12, %v11, %v8
    %14 = vrot.lane.b32.xlu0 %v13, 112
    %v15 = vpop.permute.xlu0 %14
    %vm16 = vcmask 261120
    %s17 = scalar_lea.vmem [#allocation0], 40
    %18 = vst.msk [vmem:[%s17] ss:$-24 sm:$0x3] %vm16, %v15
    %vm19 = vcmask 1048448
    %s20 = scalar_lea.vmem [#allocation0], 32
    %21 = vst.msk [vmem:[%s20] ss:$-24 sm:$0x3] %vm19, %v15
    %s22 = scalar_lea.vmem %s0, 10
    %s23 = smov 3
    %v24 = vld [vmem:[%s22] ss:$-8 sm:%s23]
    %s25 = scalar_lea.vmem %s0, 2
    %s26 = smov 3
    %v27 = vld [vmem:[%s25] ss:$8 sm:%s26]
    %vm28 = vcmask 261120
    %v29 = vsel %vm28, %v27, %v24
    %30 = vrot.lane.b32.xlu0 %v29, 96
    %v31 = vpop.permute.xlu0 %30
    %vm32 = vcmask 130048
    %s33 = scalar_lea.vmem [#allocation0], 32
    %34 = vst.msk [vmem:[%s33] ss:$-24 sm:$0x3] %vm32, %v31
    %vm35 = vcmask 1048320
    %36 = vst.msk [vmem:[#allocation0] ss:$24 sm:$0x3] %vm35, %v31
    %s37 = scalar_lea.vmem %s0, 15
    %s38 = smov 3
    %v39 = vld [vmem:[%s37] ss:$-8 sm:%s38]
    %40 = vrot.lane.b32.xlu0 %v39, 80
    %v41 = vpop.permute.xlu0 %40
    %vm42 = vcmask 1048192
    %s43 = scalar_lea.vmem [#allocation0], 40
    %44 = vst.msk [vmem:[%s43] ss:$-24 sm:$0x3] %vm42, %v41
    %s45 = scalar_lea.vmem %s0, 12
    %s46 = smov 3
    %v47 = vld [vmem:[%s45] ss:$-8 sm:%s46]
    %48 = vrot.lane.b32.xlu0 %v47, 64
    %v49 = vpop.permute.xlu0 %48
    %vm50 = vcmask 916992
    %s51 = scalar_lea.vmem [#allocation0], 32
    %52 = vst.msk [vmem:[%s51] ss:$-24 sm:$0x3] %vm50, %v49
    %s53 = scalar_lea.vmem %s0, 1
    %s54 = smov 3
    %v55 = vld [vmem:[%s53] ss:$8 sm:%s54]
    %56 = vrot.lane.b32.xlu0 %v55, 48
    %v57 = vpop.permute.xlu0 %56
    %vm58 = vcmask 785792
    %59 = vst.msk [vmem:[#allocation0] ss:$24 sm:$0x3] %vm58, %v57
    %s60 = scalar_lea.vmem %s0, 14
    %s61 = smov 3
    %v62 = vld [vmem:[%s60] ss:$-8 sm:%s61]
    %63 = vrot.lane.b32.xlu0 %v62, 32
    %v64 = vpop.permute.xlu0 %63
    %vm65 = vcmask 654592
    %s66 = scalar_lea.vmem [#allocation0], 40
    %67 = vst.msk [vmem:[%s66] ss:$-24 sm:$0x3] %vm65, %v64
    %s68 = scalar_lea.vmem %s0, 11
    %s69 = smov 3
    %v70 = vld [vmem:[%s68] ss:$-8 sm:%s69]
    %71 = vrot.lane.b32.xlu0 %v70, 16
    %v72 = vpop.permute.xlu0 %71
    %vm73 = vcmask 523392
    %s74 = scalar_lea.vmem [#allocation0], 32
    %75 = vst.msk [vmem:[%s74] ss:$-24 sm:$0x3] %vm73, %v72
    %s77 = sshll.u32 1, 1
    %s78 = ssub.s32 %s77, 1
    %v80 = vld [vmem:[#allocation0] sm:%s78]
    %s81 = sshll.u32 1, 1
    %s82 = ssub.s32 %s81, 1
    %83 = vst [vmem:[%s1] sm:%s82] %v80
    %s84 = scalar_lea.vmem [#allocation0], 8
    %v85 = vld [vmem:[%s84] sm:%s78]
    %s86 = sshll.u32 1, 1
    %s87 = ssub.s32 %s86, 1
    %s88 = scalar_lea.vmem %s1, 1
    %89 = vst [vmem:[%s88] sm:%s87] %v85
    %s90 = scalar_lea.vmem [#allocation0], 16
    %v91 = vld [vmem:[%s90] sm:%s78]
    %s92 = sshll.u32 1, 1
    %s93 = ssub.s32 %s92, 1
    %s94 = smul.addr 1, 2
    %s95 = scalar_lea.vmem %s1, %s94
    %96 = vst [vmem:[%s95] sm:%s93] %v91
    %s97 = scalar_lea.vmem [#allocation0], 24
    %v98 = vld [vmem:[%s97] sm:%s78]
    %s99 = sshll.u32 1, 1
    %s100 = ssub.s32 %s99, 1
    %s101 = smul.addr 1, 3
    %s102 = scalar_lea.vmem %s1, %s101
    %103 = vst [vmem:[%s102] sm:%s100] %v98
    %s104 = scalar_lea.vmem [#allocation0], 32
    %v105 = vld [vmem:[%s104] sm:%s78]
    %s106 = sshll.u32 1, 1
    %s107 = ssub.s32 %s106, 1
    %s108 = smul.addr 1, 4
    %s109 = scalar_lea.vmem %s1, %s108
    %110 = vst [vmem:[%s109] sm:%s107] %v105
    %s111 = scalar_lea.vmem [#allocation0], 40
    %v112 = vld [vmem:[%s111] sm:%s78]
    %s113 = sshll.u32 1, 1
    %s114 = ssub.s32 %s113, 1
    %s115 = smul.addr 1, 5
    %s116 = scalar_lea.vmem %s1, %s115
    %117 = vst [vmem:[%s116] sm:%s114] %v112

// kernel: vn_linear.1
$region0: #{vn_linear.1}
  #allocation0 [shape = 'u32[]', space=smem, size = 0x4, offset = 0x4, fixed_abs, tag = 'smem constant byte address 0x4 - core index']
  #allocation1 [shape = 'u32[144,128]{1,0:T(1,128)}', space=vmem, size = 0x12000, scoped, tag = 'internal scratch']
  %s0 = inlined_call_operand.vmem [shape: f32[8,384], index: 0, kind: input, shape index: {}]
  %s1 = inlined_call_operand.vmem [shape: bf16[384,768], index: 1, kind: input, shape index: {}]
  %s2 = inlined_call_operand.vmem [shape: f32[1,768], index: 2, kind: input, shape index: {}]
  %s3 = inlined_call_operand.vmem [shape: f32[8,768], index: 3, kind: output, shape index: {}]
  %s4 = sld [smem:[#allocation0]]
  $region22: #{vn_linear.1} parent=0
    _
  %s6 = ssub.s32 1, %s4
  %s7 = scalar_select 0, %s6, %s4
  // Predicated region
  $region2: #{vn_linear.1} parent=0 // pred_check
    _
  $region3: #{vn_linear.1} parent=0 // pred_check_branch
    %9 = sbr.rel (0) target = $region5
  $region4: #{vn_linear.1} parent=0 // pred_region
    _
  $region5: #{vn_linear.1} parent=0 // pred_fallthru
    _
  // Predicated region
  $region6: #{vn_linear.1} parent=0 // pred_check
    _
  $region7: #{vn_linear.1} parent=0 // pred_check_branch
    %11 = sbr.rel (0) target = $region9
  $region8: #{vn_linear.1} parent=0 // pred_region
    _
  $region9: #{vn_linear.1} parent=0 // pred_fallthru
    _
  // Predicated region
  $region10: #{vn_linear.1} parent=0 // pred_check
    _
  $region11: #{vn_linear.1} parent=0 // pred_check_branch
    %13 = sbr.rel (0) target = $region13
  $region12: #{vn_linear.1} parent=0 // pred_region
    _
  $region13: #{vn_linear.1} parent=0 // pred_fallthru
    _
  %v15 = vld [vmem:[%s0] sm:$0xff]
  %v16 = vld [vmem:[%s0 + $0x8] sm:$0xff]
  %v17 = vld [vmem:[%s0 + $0x10] sm:$0xff]
  %v18 = vpack.c.bf16 %v15, %v15
  %v19 = vpack.c.bf16 %v16, %v16
  %v20 = vpack.c.bf16 %v17, %v17
  %v21 = vld [vmem:[%s1] sm:$0xff]
  %v22 = vld [vmem:[%s1 + $0x8] sm:$0xff]
  %v23 = vld [vmem:[%s1 + $0x10] sm:$0xff]
  %v24 = vld [vmem:[%s1 + $0x18] sm:$0xff]
  %v25 = vld [vmem:[%s1 + $0x20] sm:$0xff]
  %v26 = vld [vmem:[%s1 + $0x28] sm:$0xff]
  %v27 = vld [vmem:[%s1 + $0x30] sm:$0xff]
  %v28 = vld [vmem:[%s1 + $0x38] sm:$0xff]
  %v29 = vld [vmem:[%s1 + $0x40] sm:$0xff]
  %v30 = vld [vmem:[%s1 + $0x48] sm:$0xff]
  %v31 = vld [vmem:[%s1 + $0x50] sm:$0xff]
  %v32 = vld [vmem:[%s1 + $0x58] sm:$0xff]
  %v33 = vld [vmem:[%s1 + $0x60] sm:$0xff]
  %v34 = vld [vmem:[%s1 + $0x68] sm:$0xff]
  %v35 = vld [vmem:[%s1 + $0x70] sm:$0xff]
  %v36 = vld [vmem:[%s1 + $0x78] sm:$0xff]
  %v37 = vld [vmem:[%s1 + $0x80] sm:$0xff]
  %v38 = vld [vmem:[%s1 + $0x88] sm:$0xff]
  %v39 = vld [vmem:[%s1 + $0x90] sm:$0xff]
  %v40 = vld [vmem:[%s1 + $0x98] sm:$0xff]
  %v41 = vld [vmem:[%s1 + $0xa0] sm:$0xff]
  %v42 = vld [vmem:[%s1 + $0xa8] sm:$0xff]
  %v43 = vld [vmem:[%s1 + $0xb0] sm:$0xff]
  %v44 = vld [vmem:[%s1 + $0xb8] sm:$0xff]
  %v45 = vld [vmem:[%s1 + $0xc0] sm:$0xff]
  %v46 = vld [vmem:[%s1 + $0xc8] sm:$0xff]
  %v47 = vld [vmem:[%s1 + $0xd0] sm:$0xff]
  %v48 = vld [vmem:[%s1 + $0xd8] sm:$0xff]
  %v49 = vld [vmem:[%s1 + $0xe0] sm:$0xff]
  %v50 = vld [vmem:[%s1 + $0xe8] sm:$0xff]
  %v51 = vld [vmem:[%s1 + $0xf0] sm:$0xff]
  %v52 = vld [vmem:[%s1 + $0xf8] sm:$0xff]
  %v53 = vld [vmem:[%s1 + $0x100] sm:$0xff]
  %v54 = vld [vmem:[%s1 + $0x108] sm:$0xff]
  %v55 = vld [vmem:[%s1 + $0x110] sm:$0xff]
  %v56 = vld [vmem:[%s1 + $0x118] sm:$0xff]
  %v57 = vld [vmem:[%s1 + $0x120] sm:$0xff]
  %v58 = vld [vmem:[%s1 + $0x128] sm:$0xff]
  %v59 = vld [vmem:[%s1 + $0x130] sm:$0xff]
  %v60 = vld [vmem:[%s1 + $0x138] sm:$0xff]
  %v61 = vld [vmem:[%s1 + $0x140] sm:$0xff]
  %v62 = vld [vmem:[%s1 + $0x148] sm:$0xff]
  %v63 = vld [vmem:[%s1 + $0x150] sm:$0xff]
  %v64 = vld [vmem:[%s1 + $0x158] sm:$0xff]
  %v65 = vld [vmem:[%s1 + $0x160] sm:$0xff]
  %v66 = vld [vmem:[%s1 + $0x168] sm:$0xff]
  %v67 = vld [vmem:[%s1 + $0x170] sm:$0xff]
  %v68 = vld [vmem:[%s1 + $0x178] sm:$0xff]
  %v69 = vld [vmem:[%s1 + $0x180] sm:$0xff]
  %v70 = vld [vmem:[%s1 + $0x188] sm:$0xff]
  %v71 = vld [vmem:[%s1 + $0x190] sm:$0xff]
  %v72 = vld [vmem:[%s1 + $0x198] sm:$0xff]
  %v73 = vld [vmem:[%s1 + $0x1a0] sm:$0xff]
  %v74 = vld [vmem:[%s1 + $0x1a8] sm:$0xff]
  %v75 = vld [vmem:[%s1 + $0x1b0] sm:$0xff]
  %v76 = vld [vmem:[%s1 + $0x1b8] sm:$0xff]
  %v77 = vld [vmem:[%s1 + $0x1c0] sm:$0xff]
  %v78 = vld [vmem:[%s1 + $0x1c8] sm:$0xff]
  %v79 = vld [vmem:[%s1 + $0x1d0] sm:$0xff]
  %v80 = vld [vmem:[%s1 + $0x1d8] sm:$0xff]
  %v81 = vld [vmem:[%s1 + $0x1e0] sm:$0xff]
  %v82 = vld [vmem:[%s1 + $0x1e8] sm:$0xff]
  %v83 = vld [vmem:[%s1 + $0x1f0] sm:$0xff]
  %v84 = vld [vmem:[%s1 + $0x1f8] sm:$0xff]
  %v85 = vld [vmem:[%s1 + $0x200] sm:$0xff]
  %v86 = vld [vmem:[%s1 + $0x208] sm:$0xff]
  %v87 = vld [vmem:[%s1 + $0x210] sm:$0xff]
  %v88 = vld [vmem:[%s1 + $0x218] sm:$0xff]
  %v89 = vld [vmem:[%s1 + $0x220] sm:$0xff]
  %v90 = vld [vmem:[%s1 + $0x228] sm:$0xff]
  %v91 = vld [vmem:[%s1 + $0x230] sm:$0xff]
  %v92 = vld [vmem:[%s1 + $0x238] sm:$0xff]
  %v93 = vld [vmem:[%s1 + $0x240] sm:$0xff]
  %v94 = vld [vmem:[%s1 + $0x248] sm:$0xff]
  %v95 = vld [vmem:[%s1 + $0x250] sm:$0xff]
  %v96 = vld [vmem:[%s1 + $0x258] sm:$0xff]
  %v97 = vld [vmem:[%s1 + $0x260] sm:$0xff]
  %v98 = vld [vmem:[%s1 + $0x268] sm:$0xff]
  %v99 = vld [vmem:[%s1 + $0x270] sm:$0xff]
  %v100 = vld [vmem:[%s1 + $0x278] sm:$0xff]
  %v101 = vld [vmem:[%s1 + $0x280] sm:$0xff]
  %v102 = vld [vmem:[%s1 + $0x288] sm:$0xff]
  %v103 = vld [vmem:[%s1 + $0x290] sm:$0xff]
  %v104 = vld [vmem:[%s1 + $0x298] sm:$0xff]
  %v105 = vld [vmem:[%s1 + $0x2a0] sm:$0xff]
  %v106 = vld [vmem:[%s1 + $0x2a8] sm:$0xff]
  %v107 = vld [vmem:[%s1 + $0x2b0] sm:$0xff]
  %v108 = vld [vmem:[%s1 + $0x2b8] sm:$0xff]
  %v109 = vld [vmem:[%s1 + $0x2c0] sm:$0xff]
  %v110 = vld [vmem:[%s1 + $0x2c8] sm:$0xff]
  %v111 = vld [vmem:[%s1 + $0x2d0] sm:$0xff]
  %v112 = vld [vmem:[%s1 + $0x2d8] sm:$0xff]
  %v113 = vld [vmem:[%s1 + $0x2e0] sm:$0xff]
  %v114 = vld [vmem:[%s1 + $0x2e8] sm:$0xff]
  %v115 = vld [vmem:[%s1 + $0x2f0] sm:$0xff]
  %v116 = vld [vmem:[%s1 + $0x2f8] sm:$0xff]
  %v117 = vld [vmem:[%s1 + $0x300] sm:$0xff]
  %v118 = vld [vmem:[%s1 + $0x308] sm:$0xff]
  %v119 = vld [vmem:[%s1 + $0x310] sm:$0xff]
  %v120 = vld [vmem:[%s1 + $0x318] sm:$0xff]
  %v121 = vld [vmem:[%s1 + $0x320] sm:$0xff]
  %v122 = vld [vmem:[%s1 + $0x328] sm:$0xff]
  %v123 = vld [vmem:[%s1 + $0x330] sm:$0xff]
  %v124 = vld [vmem:[%s1 + $0x338] sm:$0xff]
  %v125 = vld [vmem:[%s1 + $0x340] sm:$0xff]
  %v126 = vld [vmem:[%s1 + $0x348] sm:$0xff]
  %v127 = vld [vmem:[%s1 + $0x350] sm:$0xff]
  %v128 = vld [vmem:[%s1 + $0x358] sm:$0xff]
  %v129 = vld [vmem:[%s1 + $0x360] sm:$0xff]
  %v130 = vld [vmem:[%s1 + $0x368] sm:$0xff]
  %v131 = vld [vmem:[%s1 + $0x370] sm:$0xff]
  %v132 = vld [vmem:[%s1 + $0x378] sm:$0xff]
  %v133 = vld [vmem:[%s1 + $0x380] sm:$0xff]
  %v134 = vld [vmem:[%s1 + $0x388] sm:$0xff]
  %v135 = vld [vmem:[%s1 + $0x390] sm:$0xff]
  %v136 = vld [vmem:[%s1 + $0x398] sm:$0xff]
  %v137 = vld [vmem:[%s1 + $0x3a0] sm:$0xff]
  %v138 = vld [vmem:[%s1 + $0x3a8] sm:$0xff]
  %v139 = vld [vmem:[%s1 + $0x3b0] sm:$0xff]
  %v140 = vld [vmem:[%s1 + $0x3b8] sm:$0xff]
  %v141 = vld [vmem:[%s1 + $0x3c0] sm:$0xff]
  %v142 = vld [vmem:[%s1 + $0x3c8] sm:$0xff]
  %v143 = vld [vmem:[%s1 + $0x3d0] sm:$0xff]
  %v144 = vld [vmem:[%s1 + $0x3d8] sm:$0xff]
  %v145 = vld [vmem:[%s1 + $0x3e0] sm:$0xff]
  %v146 = vld [vmem:[%s1 + $0x3e8] sm:$0xff]
  %v147 = vld [vmem:[%s1 + $0x3f0] sm:$0xff]
  %v148 = vld [vmem:[%s1 + $0x3f8] sm:$0xff]
  %v149 = vld [vmem:[%s1 + $0x400] sm:$0xff]
  %v150 = vld [vmem:[%s1 + $0x408] sm:$0xff]
  %v151 = vld [vmem:[%s1 + $0x410] sm:$0xff]
  %v152 = vld [vmem:[%s1 + $0x418] sm:$0xff]
  %v153 = vld [vmem:[%s1 + $0x420] sm:$0xff]
  %v154 = vld [vmem:[%s1 + $0x428] sm:$0xff]
  %v155 = vld [vmem:[%s1 + $0x430] sm:$0xff]
  %v156 = vld [vmem:[%s1 + $0x438] sm:$0xff]
  %v157 = vld [vmem:[%s1 + $0x440] sm:$0xff]
  %v158 = vld [vmem:[%s1 + $0x448] sm:$0xff]
  %v159 = vld [vmem:[%s1 + $0x450] sm:$0xff]
  %v160 = vld [vmem:[%s1 + $0x458] sm:$0xff]
  %v161 = vld [vmem:[%s1 + $0x460] sm:$0xff]
  %v162 = vld [vmem:[%s1 + $0x468] sm:$0xff]
  %v163 = vld [vmem:[%s1 + $0x470] sm:$0xff]
  %v164 = vld [vmem:[%s1 + $0x478] sm:$0xff]
  %v165 = vld [vmem:[%s2] sm:$0x3f]
  %v167 = vlaneseq
  %v168 = vshrl.u32 %v167, 7
  %v169 = vsub.s32 0, %v168
  %v170 = vrot.slane %v165, %v169
  %v171 = vlaneseq
  %v172 = vshrl.u32 %v171, 7
  %v173 = vsub.s32 1, %v172
  %v174 = vrot.slane %v165, %v173
  %v175 = vlaneseq
  %v176 = vshrl.u32 %v175, 7
  %v177 = vsub.s32 2, %v176
  %v178 = vrot.slane %v165, %v177
  %v179 = vlaneseq
  %v180 = vshrl.u32 %v179, 7
  %v181 = vsub.s32 3, %v180
  %v182 = vrot.slane %v165, %v181
  %v183 = vlaneseq
  %v184 = vshrl.u32 %v183, 7
  %v185 = vsub.s32 4, %v184
  %v186 = vrot.slane %v165, %v185
  %v187 = vlaneseq
  %v188 = vshrl.u32 %v187, 7
  %v189 = vsub.s32 5, %v188
  %v190 = vrot.slane %v165, %v189
  %v341 = vunpack.c.l.b16 %v21
  %v342 = vunpack.c.h.b16 %v21
  %v343 = vunpack.c.l.b16 %v22
  %v344 = vunpack.c.h.b16 %v22
  %v345 = vunpack.c.l.b16 %v23
  %v346 = vunpack.c.h.b16 %v23
  %v347 = vunpack.c.l.b16 %v24
  %v348 = vunpack.c.h.b16 %v24
  %v349 = vunpack.c.l.b16 %v25
  %v350 = vunpack.c.h.b16 %v25
  %v351 = vunpack.c.l.b16 %v26
  %v352 = vunpack.c.h.b16 %v26
  %v353 = vunpack.c.l.b16 %v27
  %v354 = vunpack.c.h.b16 %v27
  %v355 = vunpack.c.l.b16 %v28
  %v356 = vunpack.c.h.b16 %v28
  %v357 = vunpack.c.l.b16 %v29
  %v358 = vunpack.c.h.b16 %v29
  %v359 = vunpack.c.l.b16 %v30
  %v360 = vunpack.c.h.b16 %v30
  %v361 = vunpack.c.l.b16 %v31
  %v362 = vunpack.c.h.b16 %v31
  %v363 = vunpack.c.l.b16 %v32
  %v364 = vunpack.c.h.b16 %v32
  %v365 = vunpack.c.l.b16 %v33
  %v366 = vunpack.c.h.b16 %v33
  %v367 = vunpack.c.l.b16 %v34
  %v368 = vunpack.c.h.b16 %v34
  %v369 = vunpack.c.l.b16 %v35
  %v370 = vunpack.c.h.b16 %v35
  %v371 = vunpack.c.l.b16 %v36
  %v372 = vunpack.c.h.b16 %v36
  %v373 = vunpack.c.l.b16 %v37
  %v374 = vunpack.c.h.b16 %v37
  %v375 = vunpack.c.l.b16 %v38
  %v376 = vunpack.c.h.b16 %v38
  %v377 = vunpack.c.l.b16 %v39
  %v378 = vunpack.c.h.b16 %v39
  %v379 = vunpack.c.l.b16 %v40
  %v380 = vunpack.c.h.b16 %v40
  %v381 = vunpack.c.l.b16 %v41
  %v382 = vunpack.c.h.b16 %v41
  %v383 = vunpack.c.l.b16 %v42
  %v384 = vunpack.c.h.b16 %v42
  %v385 = vunpack.c.l.b16 %v43
  %v386 = vunpack.c.h.b16 %v43
  %v387 = vunpack.c.l.b16 %v44
  %v388 = vunpack.c.h.b16 %v44
  %v389 = vunpack.c.l.b16 %v45
  %v390 = vunpack.c.h.b16 %v45
  %v391 = vunpack.c.l.b16 %v46
  %v392 = vunpack.c.h.b16 %v46
  %v393 = vunpack.c.l.b16 %v47
  %v394 = vunpack.c.h.b16 %v47
  %v395 = vunpack.c.l.b16 %v48
  %v396 = vunpack.c.h.b16 %v48
  %v397 = vunpack.c.l.b16 %v49
  %v398 = vunpack.c.h.b16 %v49
  %v399 = vunpack.c.l.b16 %v50
  %v400 = vunpack.c.h.b16 %v50
  %v401 = vunpack.c.l.b16 %v51
  %v402 = vunpack.c.h.b16 %v51
  %v403 = vunpack.c.l.b16 %v52
  %v404 = vunpack.c.h.b16 %v52
  %v405 = vunpack.c.l.b16 %v53
  %v406 = vunpack.c.h.b16 %v53
  %v407 = vunpack.c.l.b16 %v54
  %v408 = vunpack.c.h.b16 %v54
  %v409 = vunpack.c.l.b16 %v55
  %v410 = vunpack.c.h.b16 %v55
  %v411 = vunpack.c.l.b16 %v56
  %v412 = vunpack.c.h.b16 %v56
  %v413 = vunpack.c.l.b16 %v57
  %v414 = vunpack.c.h.b16 %v57
  %v415 = vunpack.c.l.b16 %v58
  %v416 = vunpack.c.h.b16 %v58
  %v417 = vunpack.c.l.b16 %v59
  %v418 = vunpack.c.h.b16 %v59
  %v419 = vunpack.c.l.b16 %v60
  %v420 = vunpack.c.h.b16 %v60
  %v421 = vunpack.c.l.b16 %v61
  %v422 = vunpack.c.h.b16 %v61
  %v423 = vunpack.c.l.b16 %v62
  %v424 = vunpack.c.h.b16 %v62
  %v425 = vunpack.c.l.b16 %v63
  %v426 = vunpack.c.h.b16 %v63
  %v427 = vunpack.c.l.b16 %v64
  %v428 = vunpack.c.h.b16 %v64
  %v429 = vunpack.c.l.b16 %v65
  %v430 = vunpack.c.h.b16 %v65
  %v431 = vunpack.c.l.b16 %v66
  %v432 = vunpack.c.h.b16 %v66
  %v433 = vunpack.c.l.b16 %v67
  %v434 = vunpack.c.h.b16 %v67
  %v435 = vunpack.c.l.b16 %v68
  %v436 = vunpack.c.h.b16 %v68
  %v437 = vunpack.c.l.b16 %v69
  %v438 = vunpack.c.h.b16 %v69
  %v439 = vunpack.c.l.b16 %v70
  %v440 = vunpack.c.h.b16 %v70
  %v441 = vunpack.c.l.b16 %v71
  %v442 = vunpack.c.h.b16 %v71
  %v443 = vunpack.c.l.b16 %v72
  %v444 = vunpack.c.h.b16 %v72
  %v445 = vunpack.c.l.b16 %v73
  %v446 = vunpack.c.h.b16 %v73
  %v447 = vunpack.c.l.b16 %v74
  %v448 = vunpack.c.h.b16 %v74
  %v449 = vunpack.c.l.b16 %v75
  %v450 = vunpack.c.h.b16 %v75
  %v451 = vunpack.c.l.b16 %v76
  %v452 = vunpack.c.h.b16 %v76
  %v453 = vunpack.c.l.b16 %v77
  %v454 = vunpack.c.h.b16 %v77
  %v455 = vunpack.c.l.b16 %v78
  %v456 = vunpack.c.h.b16 %v78
  %v457 = vunpack.c.l.b16 %v79
  %v458 = vunpack.c.h.b16 %v79
  %v459 = vunpack.c.l.b16 %v80
  %v460 = vunpack.c.h.b16 %v80
  %v461 = vunpack.c.l.b16 %v81
  %v462 = vunpack.c.h.b16 %v81
  %v463 = vunpack.c.l.b16 %v82
  %v464 = vunpack.c.h.b16 %v82
  %v465 = vunpack.c.l.b16 %v83
  %v466 = vunpack.c.h.b16 %v83
  %v467 = vunpack.c.l.b16 %v84
  %v468 = vunpack.c.h.b16 %v84
  %v469 = vunpack.c.l.b16 %v85
  %v470 = vunpack.c.h.b16 %v85
  %v471 = vunpack.c.l.b16 %v86
  %v472 = vunpack.c.h.b16 %v86
  %v473 = vunpack.c.l.b16 %v87
  %v474 = vunpack.c.h.b16 %v87
  %v475 = vunpack.c.l.b16 %v88
  %v476 = vunpack.c.h.b16 %v88
  %v477 = vunpack.c.l.b16 %v89
  %v478 = vunpack.c.h.b16 %v89
  %v479 = vunpack.c.l.b16 %v90
  %v480 = vunpack.c.h.b16 %v90
  %v481 = vunpack.c.l.b16 %v91
  %v482 = vunpack.c.h.b16 %v91
  %v483 = vunpack.c.l.b16 %v92
  %v484 = vunpack.c.h.b16 %v92
  %v485 = vunpack.c.l.b16 %v93
  %v486 = vunpack.c.h.b16 %v93
  %v487 = vunpack.c.l.b16 %v94
  %v488 = vunpack.c.h.b16 %v94
  %v489 = vunpack.c.l.b16 %v95
  %v490 = vunpack.c.h.b16 %v95
  %v491 = vunpack.c.l.b16 %v96
  %v492 = vunpack.c.h.b16 %v96
  %v493 = vunpack.c.l.b16 %v97
  %v494 = vunpack.c.h.b16 %v97
  %v495 = vunpack.c.l.b16 %v98
  %v496 = vunpack.c.h.b16 %v98
  %v497 = vunpack.c.l.b16 %v99
  %v498 = vunpack.c.h.b16 %v99
  %v499 = vunpack.c.l.b16 %v100
  %v500 = vunpack.c.h.b16 %v100
  %v501 = vunpack.c.l.b16 %v101
  %v502 = vunpack.c.h.b16 %v101
  %v503 = vunpack.c.l.b16 %v102
  %v504 = vunpack.c.h.b16 %v102
  %v505 = vunpack.c.l.b16 %v103
  %v506 = vunpack.c.h.b16 %v103
  %v507 = vunpack.c.l.b16 %v104
  %v508 = vunpack.c.h.b16 %v104
  %v509 = vunpack.c.l.b16 %v105
  %v510 = vunpack.c.h.b16 %v105
  %v511 = vunpack.c.l.b16 %v106
  %v512 = vunpack.c.h.b16 %v106
  %v513 = vunpack.c.l.b16 %v107
  %v514 = vunpack.c.h.b16 %v107
  %v515 = vunpack.c.l.b16 %v108
  %v516 = vunpack.c.h.b16 %v108
  %v517 = vunpack.c.l.b16 %v109
  %v518 = vunpack.c.h.b16 %v109
  %v519 = vunpack.c.l.b16 %v110
  %v520 = vunpack.c.h.b16 %v110
  %v521 = vunpack.c.l.b16 %v111
  %v522 = vunpack.c.h.b16 %v111
  %v523 = vunpack.c.l.b16 %v112
  %v524 = vunpack.c.h.b16 %v112
  %v525 = vunpack.c.l.b16 %v113
  %v526 = vunpack.c.h.b16 %v113
  %v527 = vunpack.c.l.b16 %v114
  %v528 = vunpack.c.h.b16 %v114
  %v529 = vunpack.c.l.b16 %v115
  %v530 = vunpack.c.h.b16 %v115
  %v531 = vunpack.c.l.b16 %v116
  %v532 = vunpack.c.h.b16 %v116
  %v533 = vunpack.c.l.b16 %v117
  %v534 = vunpack.c.h.b16 %v117
  %v535 = vunpack.c.l.b16 %v118
  %v536 = vunpack.c.h.b16 %v118
  %v537 = vunpack.c.l.b16 %v119
  %v538 = vunpack.c.h.b16 %v119
  %v539 = vunpack.c.l.b16 %v120
  %v540 = vunpack.c.h.b16 %v120
  %v541 = vunpack.c.l.b16 %v121
  %v542 = vunpack.c.h.b16 %v121
  %v543 = vunpack.c.l.b16 %v122
  %v544 = vunpack.c.h.b16 %v122
  %v545 = vunpack.c.l.b16 %v123
  %v546 = vunpack.c.h.b16 %v123
  %v547 = vunpack.c.l.b16 %v124
  %v548 = vunpack.c.h.b16 %v124
  %v549 = vunpack.c.l.b16 %v125
  %v550 = vunpack.c.h.b16 %v125
  %v551 = vunpack.c.l.b16 %v126
  %v552 = vunpack.c.h.b16 %v126
  %v553 = vunpack.c.l.b16 %v127
  %v554 = vunpack.c.h.b16 %v127
  %v555 = vunpack.c.l.b16 %v128
  %v556 = vunpack.c.h.b16 %v128
  %v557 = vunpack.c.l.b16 %v129
  %v558 = vunpack.c.h.b16 %v129
  %v559 = vunpack.c.l.b16 %v130
  %v560 = vunpack.c.h.b16 %v130
  %v561 = vunpack.c.l.b16 %v131
  %v562 = vunpack.c.h.b16 %v131
  %v563 = vunpack.c.l.b16 %v132
  %v564 = vunpack.c.h.b16 %v132
  %v565 = vunpack.c.l.b16 %v133
  %v566 = vunpack.c.h.b16 %v133
  %v567 = vunpack.c.l.b16 %v134
  %v568 = vunpack.c.h.b16 %v134
  %v569 = vunpack.c.l.b16 %v135
  %v570 = vunpack.c.h.b16 %v135
  %v571 = vunpack.c.l.b16 %v136
  %v572 = vunpack.c.h.b16 %v136
  %v573 = vunpack.c.l.b16 %v137
  %v574 = vunpack.c.h.b16 %v137
  %v575 = vunpack.c.l.b16 %v138
  %v576 = vunpack.c.h.b16 %v138
  %v577 = vunpack.c.l.b16 %v139
  %v578 = vunpack.c.h.b16 %v139
  %v579 = vunpack.c.l.b16 %v140
  %v580 = vunpack.c.h.b16 %v140
  %v581 = vunpack.c.l.b16 %v141
  %v582 = vunpack.c.h.b16 %v141
  %v583 = vunpack.c.l.b16 %v142
  %v584 = vunpack.c.h.b16 %v142
  %v585 = vunpack.c.l.b16 %v143
  %v586 = vunpack.c.h.b16 %v143
  %v587 = vunpack.c.l.b16 %v144
  %v588 = vunpack.c.h.b16 %v144
  %v589 = vunpack.c.l.b16 %v145
  %v590 = vunpack.c.h.b16 %v145
  %v591 = vunpack.c.l.b16 %v146
  %v592 = vunpack.c.h.b16 %v146
  %v593 = vunpack.c.l.b16 %v147
  %v594 = vunpack.c.h.b16 %v147
  %v595 = vunpack.c.l.b16 %v148
  %v596 = vunpack.c.h.b16 %v148
  %v597 = vunpack.c.l.b16 %v149
  %v598 = vunpack.c.h.b16 %v149
  %v599 = vunpack.c.l.b16 %v150
  %v600 = vunpack.c.h.b16 %v150
  %v601 = vunpack.c.l.b16 %v151
  %v602 = vunpack.c.h.b16 %v151
  %v603 = vunpack.c.l.b16 %v152
  %v604 = vunpack.c.h.b16 %v152
  %v605 = vunpack.c.l.b16 %v153
  %v606 = vunpack.c.h.b16 %v153
  %v607 = vunpack.c.l.b16 %v154
  %v608 = vunpack.c.h.b16 %v154
  %v609 = vunpack.c.l.b16 %v155
  %v610 = vunpack.c.h.b16 %v155
  %v611 = vunpack.c.l.b16 %v156
  %v612 = vunpack.c.h.b16 %v156
  %v613 = vunpack.c.l.b16 %v157
  %v614 = vunpack.c.h.b16 %v157
  %v615 = vunpack.c.l.b16 %v158
  %v616 = vunpack.c.h.b16 %v158
  %v617 = vunpack.c.l.b16 %v159
  %v618 = vunpack.c.h.b16 %v159
  %v619 = vunpack.c.l.b16 %v160
  %v620 = vunpack.c.h.b16 %v160
  %v621 = vunpack.c.l.b16 %v161
  %v622 = vunpack.c.h.b16 %v161
  %v623 = vunpack.c.l.b16 %v162
  %v624 = vunpack.c.h.b16 %v162
  %v625 = vunpack.c.l.b16 %v163
  %v626 = vunpack.c.h.b16 %v163
  %v627 = vunpack.c.l.b16 %v164
  %v628 = vunpack.c.h.b16 %v164
  %v629 = vpack.c.b16 %v347, %v341
  %v630 = vpack.c.b16 %v348, %v342
  %v631 = vpack.c.b16 %v349, %v343
  %v632 = vpack.c.b16 %v350, %v344
  %v633 = vpack.c.b16 %v351, %v345
  %v634 = vpack.c.b16 %v352, %v346
  %v635 = vpack.c.b16 %v359, %v353
  %v636 = vpack.c.b16 %v360, %v354
  %v637 = vpack.c.b16 %v361, %v355
  %v638 = vpack.c.b16 %v362, %v356
  %v639 = vpack.c.b16 %v363, %v357
  %v640 = vpack.c.b16 %v364, %v358
  %v641 = vpack.c.b16 %v371, %v365
  %v642 = vpack.c.b16 %v372, %v366
  %v643 = vpack.c.b16 %v373, %v367
  %v644 = vpack.c.b16 %v374, %v368
  %v645 = vpack.c.b16 %v375, %v369
  %v646 = vpack.c.b16 %v376, %v370
  %v647 = vpack.c.b16 %v383, %v377
  %v648 = vpack.c.b16 %v384, %v378
  %v649 = vpack.c.b16 %v385, %v379
  %v650 = vpack.c.b16 %v386, %v380
  %v651 = vpack.c.b16 %v387, %v381
  %v652 = vpack.c.b16 %v388, %v382
  %v653 = vpack.c.b16 %v395, %v389
  %v654 = vpack.c.b16 %v396, %v390
  %v655 = vpack.c.b16 %v397, %v391
  %v656 = vpack.c.b16 %v398, %v392
  %v657 = vpack.c.b16 %v399, %v393
  %v658 = vpack.c.b16 %v400, %v394
  %v659 = vpack.c.b16 %v407, %v401
  %v660 = vpack.c.b16 %v408, %v402
  %v661 = vpack.c.b16 %v409, %v403
  %v662 = vpack.c.b16 %v410, %v404
  %v663 = vpack.c.b16 %v411, %v405
  %v664 = vpack.c.b16 %v412, %v406
  %v665 = vpack.c.b16 %v419, %v413
  %v666 = vpack.c.b16 %v420, %v414
  %v667 = vpack.c.b16 %v421, %v415
  %v668 = vpack.c.b16 %v422, %v416
  %v669 = vpack.c.b16 %v423, %v417
  %v670 = vpack.c.b16 %v424, %v418
  %v671 = vpack.c.b16 %v431, %v425
  %v672 = vpack.c.b16 %v432, %v426
  %v673 = vpack.c.b16 %v433, %v427
  %v674 = vpack.c.b16 %v434, %v428
  %v675 = vpack.c.b16 %v435, %v429
  %v676 = vpack.c.b16 %v436, %v430
  %v677 = vpack.c.b16 %v443, %v437
  %v678 = vpack.c.b16 %v444, %v438
  %v679 = vpack.c.b16 %v445, %v439
  %v680 = vpack.c.b16 %v446, %v440
  %v681 = vpack.c.b16 %v447, %v441
  %v682 = vpack.c.b16 %v448, %v442
  %v683 = vpack.c.b16 %v455, %v449
  %v684 = vpack.c.b16 %v456, %v450
  %v685 = vpack.c.b16 %v457, %v451
  %v686 = vpack.c.b16 %v458, %v452
  %v687 = vpack.c.b16 %v459, %v453
  %v688 = vpack.c.b16 %v460, %v454
  %v689 = vpack.c.b16 %v467, %v461
  %v690 = vpack.c.b16 %v468, %v462
  %v691 = vpack.c.b16 %v469, %v463
  %v692 = vpack.c.b16 %v470, %v464
  %v693 = vpack.c.b16 %v471, %v465
  %v694 = vpack.c.b16 %v472, %v466
  %v695 = vpack.c.b16 %v479, %v473
  %v696 = vpack.c.b16 %v480, %v474
  %v697 = vpack.c.b16 %v481, %v475
  %v698 = vpack.c.b16 %v482, %v476
  %v699 = vpack.c.b16 %v483, %v477
  %v700 = vpack.c.b16 %v484, %v478
  %v701 = vpack.c.b16 %v491, %v485
  %v702 = vpack.c.b16 %v492, %v486
  %v703 = vpack.c.b16 %v493, %v487
  %v704 = vpack.c.b16 %v494, %v488
  %v705 = vpack.c.b16 %v495, %v489
  %v706 = vpack.c.b16 %v496, %v490
  %v707 = vpack.c.b16 %v503, %v497
  %v708 = vpack.c.b16 %v504, %v498
  %v709 = vpack.c.b16 %v505, %v499
  %v710 = vpack.c.b16 %v506, %v500
  %v711 = vpack.c.b16 %v507, %v501
  %v712 = vpack.c.b16 %v508, %v502
  %v713 = vpack.c.b16 %v515, %v509
  %v714 = vpack.c.b16 %v516, %v510
  %v715 = vpack.c.b16 %v517, %v511
  %v716 = vpack.c.b16 %v518, %v512
  %v717 = vpack.c.b16 %v519, %v513
  %v718 = vpack.c.b16 %v520, %v514
  %v719 = vpack.c.b16 %v527, %v521
  %v720 = vpack.c.b16 %v528, %v522
  %v721 = vpack.c.b16 %v529, %v523
  %v722 = vpack.c.b16 %v530, %v524
  %v723 = vpack.c.b16 %v531, %v525
  %v724 = vpack.c.b16 %v532, %v526
  %v725 = vpack.c.b16 %v539, %v533
  %v726 = vpack.c.b16 %v540, %v534
  %v727 = vpack.c.b16 %v541, %v535
  %v728 = vpack.c.b16 %v542, %v536
  %v729 = vpack.c.b16 %v543, %v537
  %v730 = vpack.c.b16 %v544, %v538
  %v731 = vpack.c.b16 %v551, %v545
  %v732 = vpack.c.b16 %v552, %v546
  %v733 = vpack.c.b16 %v553, %v547
  %v734 = vpack.c.b16 %v554, %v548
  %v735 = vpack.c.b16 %v555, %v549
  %v736 = vpack.c.b16 %v556, %v550
  %v737 = vpack.c.b16 %v563, %v557
  %v738 = vpack.c.b16 %v564, %v558
  %v739 = vpack.c.b16 %v565, %v559
  %v740 = vpack.c.b16 %v566, %v560
  %v741 = vpack.c.b16 %v567, %v561
  %v742 = vpack.c.b16 %v568, %v562
  %v743 = vpack.c.b16 %v575, %v569
  %v744 = vpack.c.b16 %v576, %v570
  %v745 = vpack.c.b16 %v577, %v571
  %v746 = vpack.c.b16 %v578, %v572
  %v747 = vpack.c.b16 %v579, %v573
  %v748 = vpack.c.b16 %v580, %v574
  %v749 = vpack.c.b16 %v587, %v581
  %v750 = vpack.c.b16 %v588, %v582
  %v751 = vpack.c.b16 %v589, %v583
  %v752 = vpack.c.b16 %v590, %v584
  %v753 = vpack.c.b16 %v591, %v585
  %v754 = vpack.c.b16 %v592, %v586
  %v755 = vpack.c.b16 %v599, %v593
  %v756 = vpack.c.b16 %v600, %v594
  %v757 = vpack.c.b16 %v601, %v595
  %v758 = vpack.c.b16 %v602, %v596
  %v759 = vpack.c.b16 %v603, %v597
  %v760 = vpack.c.b16 %v604, %v598
  %v761 = vpack.c.b16 %v611, %v605
  %v762 = vpack.c.b16 %v612, %v606
  %v763 = vpack.c.b16 %v613, %v607
  %v764 = vpack.c.b16 %v614, %v608
  %v765 = vpack.c.b16 %v615, %v609
  %v766 = vpack.c.b16 %v616, %v610
  %v767 = vpack.c.b16 %v623, %v617
  %v768 = vpack.c.b16 %v624, %v618
  %v769 = vpack.c.b16 %v625, %v619
  %v770 = vpack.c.b16 %v626, %v620
  %v771 = vpack.c.b16 %v627, %v621
  %v772 = vpack.c.b16 %v628, %v622
  %917 = vmatprep.subr.bf16.mxu0 %v672
  %918 = vmatpush1.bf16.msra.mxu0 %v671
  %919 = vmatprep.subr.bf16.mxu0 %v666
  %920 = vmatpush1.bf16.msra.mxu0 %v665
  %921 = vmatprep.subr.bf16.mxu0 %v660
  %922 = vmatpush1.bf16.msra.mxu0 %v659
  %923 = vmatprep.subr.bf16.mxu0 %v654
  %924 = vmatpush1.bf16.msra.mxu0 %v653
  %925 = vmatprep.subr.bf16.mxu0 %v648
  %926 = vmatpush1.bf16.msra.mxu0 %v647
  %927 = vmatprep.subr.bf16.mxu0 %v642
  %928 = vmatpush1.bf16.msra.mxu0 %v641
  %929 = vmatprep.subr.bf16.mxu0 %v636
  %930 = vmatpush1.bf16.msra.mxu0 %v635
  %931 = vmatprep.subr.bf16.mxu0 %v630
  %932 = vmatpush1.bf16.msra.mxu0 %v629
  %933 = vmatprep.subr.bf16.mxu0 %v720
  %934 = vmatpush2.bf16.msra.mxu0 %v719
  %935 = vmatprep.subr.bf16.mxu0 %v714
  %936 = vmatpush2.bf16.msra.mxu0 %v713
  %937 = vmatprep.subr.bf16.mxu0 %v708
  %938 = vmatpush2.bf16.msra.mxu0 %v707
  %939 = vmatprep.subr.bf16.mxu0 %v702
  %940 = vmatpush2.bf16.msra.mxu0 %v701
  %941 = vmatprep.subr.bf16.mxu0 %v696
  %942 = vmatpush2.bf16.msra.mxu0 %v695
  %943 = vmatprep.subr.bf16.mxu0 %v690
  %944 = vmatpush2.bf16.msra.mxu0 %v689
  %945 = vmatprep.subr.bf16.mxu0 %v684
  %946 = vmatpush2.bf16.msra.mxu0 %v683
  %947 = vmatprep.subr.bf16.mxu0 %v678
  %948 = vmatpush2.bf16.msra.mxu0 %v677
  %949 = vmatprep.mubr.bf16.mxu0 %v19
  %950 = vmatmul.mubr.bf16.gmra.mxu0 %v18
  %v951 = vpop.f32.mrf.mxu0
  %v952 = vadd.f32 %v170, %v951
  %v953 = vpop.f32.mrf.mxu0
  %v954 = vadd.f32 %v174, %v953
  %v955 = vpop.f32.mrf.mxu0
  %v956 = vpop.f32.mrf.mxu0
  %957 = vdwg.mxu0
  %958 = vmatprep.subr.bf16.mxu0 %v768
  %959 = vmatpush1.bf16.msra.mxu0 %v767
  %960 = vmatprep.subr.bf16.mxu0 %v762
  %961 = vmatpush1.bf16.msra.mxu0 %v761
  %962 = vmatprep.subr.bf16.mxu0 %v756
  %963 = vmatpush1.bf16.msra.mxu0 %v755
  %964 = vmatprep.subr.bf16.mxu0 %v750
  %965 = vmatpush1.bf16.msra.mxu0 %v749
  %966 = vmatprep.subr.bf16.mxu0 %v744
  %967 = vmatpush1.bf16.msra.mxu0 %v743
  %968 = vmatprep.subr.bf16.mxu0 %v738
  %969 = vmatpush1.bf16.msra.mxu0 %v737
  %970 = vmatprep.subr.bf16.mxu0 %v732
  %971 = vmatpush1.bf16.msra.mxu0 %v731
  %972 = vmatprep.subr.bf16.mxu0 %v726
  %973 = vmatpush1.bf16.msra.mxu0 %v725
  %974 = vmatprep.subr.bf16.mxu0 0
  %975 = vmatpush2.bf16.msra.mxu0 0
  %976 = vmatprep.subr.bf16.mxu0 0
  %977 = vmatpush2.bf16.msra.mxu0 0
  %978 = vmatprep.subr.bf16.mxu0 0
  %979 = vmatpush2.bf16.msra.mxu0 0
  %980 = vmatprep.subr.bf16.mxu0 0
  %981 = vmatpush2.bf16.msra.mxu0 0
  %982 = vmatprep.subr.bf16.mxu0 0
  %983 = vmatpush2.bf16.msra.mxu0 0
  %984 = vmatprep.subr.bf16.mxu0 0
  %985 = vmatpush2.bf16.msra.mxu0 0
  %986 = vmatprep.subr.bf16.mxu0 0
  %987 = vmatpush2.bf16.msra.mxu0 0
  %988 = vmatprep.subr.bf16.mxu0 0
  %989 = vmatpush2.bf16.msra.mxu0 0
  %990 = vmatprep.mubr.bf16.mxu0 0
  %991 = vmatmul.mubr.bf16.gmra.mxu0 %v20
  %v992 = vpop.f32.mrf.mxu0
  %v993 = vadd.f32 %v952, %v992
  %v994 = vpop.f32.mrf.mxu0
  %v995 = vadd.f32 %v954, %v994
  %v996 = vpop.f32.mrf.mxu0
  %v997 = vpop.f32.mrf.mxu0
  %998 = vdwg.mxu0
  %999 = vmatprep.subr.bf16.mxu0 %v674
  %1000 = vmatpush1.bf16.msra.mxu0 %v673
  %1001 = vmatprep.subr.bf16.mxu0 %v668
  %1002 = vmatpush1.bf16.msra.mxu0 %v667
  %1003 = vmatprep.subr.bf16.mxu0 %v662
  %1004 = vmatpush1.bf16.msra.mxu0 %v661
  %1005 = vmatprep.subr.bf16.mxu0 %v656
  %1006 = vmatpush1.bf16.msra.mxu0 %v655
  %1007 = vmatprep.subr.bf16.mxu0 %v650
  %1008 = vmatpush1.bf16.msra.mxu0 %v649
  %1009 = vmatprep.subr.bf16.mxu0 %v644
  %1010 = vmatpush1.bf16.msra.mxu0 %v643
  %1011 = vmatprep.subr.bf16.mxu0 %v638
  %1012 = vmatpush1.bf16.msra.mxu0 %v637
  %1013 = vmatprep.subr.bf16.mxu0 %v632
  %1014 = vmatpush1.bf16.msra.mxu0 %v631
  %1015 = vmatprep.subr.bf16.mxu0 %v722
  %1016 = vmatpush2.bf16.msra.mxu0 %v721
  %1017 = vmatprep.subr.bf16.mxu0 %v716
  %1018 = vmatpush2.bf16.msra.mxu0 %v715
  %1019 = vmatprep.subr.bf16.mxu0 %v710
  %1020 = vmatpush2.bf16.msra.mxu0 %v709
  %1021 = vmatprep.subr.bf16.mxu0 %v704
  %1022 = vmatpush2.bf16.msra.mxu0 %v703
  %1023 = vmatprep.subr.bf16.mxu0 %v698
  %1024 = vmatpush2.bf16.msra.mxu0 %v697
  %1025 = vmatprep.subr.bf16.mxu0 %v692
  %1026 = vmatpush2.bf16.msra.mxu0 %v691
  %1027 = vmatprep.subr.bf16.mxu0 %v686
  %1028 = vmatpush2.bf16.msra.mxu0 %v685
  %1029 = vmatprep.subr.bf16.mxu0 %v680
  %1030 = vmatpush2.bf16.msra.mxu0 %v679
  %1031 = vmatprep.mubr.bf16.mxu0 %v19
  %1032 = vmatmul.mubr.bf16.gmra.mxu0 %v18
  %v1033 = vpop.f32.mrf.mxu0
  %v1034 = vadd.f32 %v178, %v1033
  %v1035 = vpop.f32.mrf.mxu0
  %v1036 = vadd.f32 %v182, %v1035
  %v1037 = vpop.f32.mrf.mxu0
  %v1038 = vpop.f32.mrf.mxu0
  %1039 = vdwg.mxu0
  %1040 = vmatprep.subr.bf16.mxu0 %v770
  %1041 = vmatpush1.bf16.msra.mxu0 %v769
  %1042 = vmatprep.subr.bf16.mxu0 %v764
  %1043 = vmatpush1.bf16.msra.mxu0 %v763
  %1044 = vmatprep.subr.bf16.mxu0 %v758
  %1045 = vmatpush1.bf16.msra.mxu0 %v757
  %1046 = vmatprep.subr.bf16.mxu0 %v752
  %1047 = vmatpush1.bf16.msra.mxu0 %v751
  %1048 = vmatprep.subr.bf16.mxu0 %v746
  %1049 = vmatpush1.bf16.msra.mxu0 %v745
  %1050 = vmatprep.subr.bf16.mxu0 %v740
  %1051 = vmatpush1.bf16.msra.mxu0 %v739
  %1052 = vmatprep.subr.bf16.mxu0 %v734
  %1053 = vmatpush1.bf16.msra.mxu0 %v733
  %1054 = vmatprep.subr.bf16.mxu0 %v728
  %1055 = vmatpush1.bf16.msra.mxu0 %v727
  %1056 = vmatprep.subr.bf16.mxu0 0
  %1057 = vmatpush2.bf16.msra.mxu0 0
  %1058 = vmatprep.subr.bf16.mxu0 0
  %1059 = vmatpush2.bf16.msra.mxu0 0
  %1060 = vmatprep.subr.bf16.mxu0 0
  %1061 = vmatpush2.bf16.msra.mxu0 0
  %1062 = vmatprep.subr.bf16.mxu0 0
  %1063 = vmatpush2.bf16.msra.mxu0 0
  %1064 = vmatprep.subr.bf16.mxu0 0
  %1065 = vmatpush2.bf16.msra.mxu0 0
  %1066 = vmatprep.subr.bf16.mxu0 0
  %1067 = vmatpush2.bf16.msra.mxu0 0
  %1068 = vmatprep.subr.bf16.mxu0 0
  %1069 = vmatpush2.bf16.msra.mxu0 0
  %1070 = vmatprep.subr.bf16.mxu0 0
  %1071 = vmatpush2.bf16.msra.mxu0 0
  %1072 = vmatprep.mubr.bf16.mxu0 0
  %1073 = vmatmul.mubr.bf16.gmra.mxu0 %v20
  %v1074 = vpop.f32.mrf.mxu0
  %v1075 = vadd.f32 %v1034, %v1074
  %v1076 = vpop.f32.mrf.mxu0
  %v1077 = vadd.f32 %v1036, %v1076
  %v1078 = vpop.f32.mrf.mxu0
  %v1079 = vpop.f32.mrf.mxu0
  %1080 = vdwg.mxu0
  %1081 = vmatprep.subr.bf16.mxu0 %v676
  %1082 = vmatpush1.bf16.msra.mxu0 %v675
  %1083 = vmatprep.subr.bf16.mxu0 %v670
  %1084 = vmatpush1.bf16.msra.mxu0 %v669
  %1085 = vmatprep.subr.bf16.mxu0 %v664
  %1086 = vmatpush1.bf16.msra.mxu0 %v663
  %1087 = vmatprep.subr.bf16.mxu0 %v658
  %1088 = vmatpush1.bf16.msra.mxu0 %v657
  %1089 = vmatprep.subr.bf16.mxu0 %v652
  %1090 = vmatpush1.bf16.msra.mxu0 %v651
  %1091 = vmatprep.subr.bf16.mxu0 %v646
  %1092 = vmatpush1.bf16.msra.mxu0 %v645
  %1093 = vmatprep.subr.bf16.mxu0 %v640
  %1094 = vmatpush1.bf16.msra.mxu0 %v639
  %1095 = vmatprep.subr.bf16.mxu0 %v634
  %1096 = vmatpush1.bf16.msra.mxu0 %v633
  %1097 = vmatprep.subr.bf16.mxu0 %v724
  %1098 = vmatpush2.bf16.msra.mxu0 %v723
  %1099 = vmatprep.subr.bf16.mxu0 %v718
  %1100 = vmatpush2.bf16.msra.mxu0 %v717
  %1101 = vmatprep.subr.bf16.mxu0 %v712
  %1102 = vmatpush2.bf16.msra.mxu0 %v711
  %1103 = vmatprep.subr.bf16.mxu0 %v706
  %1104 = vmatpush2.bf16.msra.mxu0 %v705
  %1105 = vmatprep.subr.bf16.mxu0 %v700
  %1106 = vmatpush2.bf16.msra.mxu0 %v699
  %1107 = vmatprep.subr.bf16.mxu0 %v694
  %1108 = vmatpush2.bf16.msra.mxu0 %v693
  %1109 = vmatprep.subr.bf16.mxu0 %v688
  %1110 = vmatpush2.bf16.msra.mxu0 %v687
  %1111 = vmatprep.subr.bf16.mxu0 %v682
  %1112 = vmatpush2.bf16.msra.mxu0 %v681
  %1113 = vmatprep.mubr.bf16.mxu0 %v19
  %1114 = vmatmul.mubr.bf16.gmra.mxu0 %v18
  %v1115 = vpop.f32.mrf.mxu0
  %v1116 = vadd.f32 %v186, %v1115
  %v1117 = vpop.f32.mrf.mxu0
  %v1118 = vadd.f32 %v190, %v1117
  %v1119 = vpop.f32.mrf.mxu0
  %v1120 = vpop.f32.mrf.mxu0
  %1121 = vdwg.mxu0
  %1122 = vmatprep.subr.bf16.mxu0 %v772
  %1123 = vmatpush1.bf16.msra.mxu0 %v771
  %1124 = vmatprep.subr.bf16.mxu0 %v766
  %1125 = vmatpush1.bf16.msra.mxu0 %v765
  %1126 = vmatprep.subr.bf16.mxu0 %v760
  %1127 = vmatpush1.bf16.msra.mxu0 %v759
  %1128 = vmatprep.subr.bf16.mxu0 %v754
  %1129 = vmatpush1.bf16.msra.mxu0 %v753
  %1130 = vmatprep.subr.bf16.mxu0 %v748
  %1131 = vmatpush1.bf16.msra.mxu0 %v747
  %1132 = vmatprep.subr.bf16.mxu0 %v742
  %1133 = vmatpush1.bf16.msra.mxu0 %v741
  %1134 = vmatprep.subr.bf16.mxu0 %v736
  %1135 = vmatpush1.bf16.msra.mxu0 %v735
  %1136 = vmatprep.subr.bf16.mxu0 %v730
  %1137 = vmatpush1.bf16.msra.mxu0 %v729
  %1138 = vmatprep.subr.bf16.mxu0 0
  %1139 = vmatpush2.bf16.msra.mxu0 0
  %1140 = vmatprep.subr.bf16.mxu0 0
  %1141 = vmatpush2.bf16.msra.mxu0 0
  %1142 = vmatprep.subr.bf16.mxu0 0
  %1143 = vmatpush2.bf16.msra.mxu0 0
  %1144 = vmatprep.subr.bf16.mxu0 0
  %1145 = vmatpush2.bf16.msra.mxu0 0
  %1146 = vmatprep.subr.bf16.mxu0 0
  %1147 = vmatpush2.bf16.msra.mxu0 0
  %1148 = vmatprep.subr.bf16.mxu0 0
  %1149 = vmatpush2.bf16.msra.mxu0 0
  %1150 = vmatprep.subr.bf16.mxu0 0
  %1151 = vmatpush2.bf16.msra.mxu0 0
  %1152 = vmatprep.subr.bf16.mxu0 0
  %1153 = vmatpush2.bf16.msra.mxu0 0
  %1154 = vmatprep.mubr.bf16.mxu0 0
  %1155 = vmatmul.mubr.bf16.gmra.mxu0 %v20
  %v1156 = vpop.f32.mrf.mxu0
  %v1157 = vadd.f32 %v1116, %v1156
  %v1158 = vpop.f32.mrf.mxu0
  %v1159 = vadd.f32 %v1118, %v1158
  %v1160 = vpop.f32.mrf.mxu0
  %v1161 = vpop.f32.mrf.mxu0
  %1162 = vdwg.mxu0
  %1163 = vst [vmem:[%s3] sm:$0xff] %v993
  %1164 = vst [vmem:[%s3 + $0x8] sm:$0xff] %v995
  %1165 = vst [vmem:[%s3 + $0x10] sm:$0xff] %v1075
  %1166 = vst [vmem:[%s3 + $0x18] sm:$0xff] %v1077
  %1167 = vst [vmem:[%s3 + $0x20] sm:$0xff] %v1157
  %1168 = vst [vmem:[%s3 + $0x28] sm:$0xff] %v1159
  // Predicated region
  $region14: #{vn_linear.1} parent=0 // pred_check
    _
  $region15: #{vn_linear.1} parent=0 // pred_check_branch
    %1170 = sbr.rel (0) target = $region17
  $region16: #{vn_linear.1} parent=0 // pred_region
    _
  $region17: #{vn_linear.1} parent=0 // pred_fallthru
    _
  // Predicated region
  $region18: #{vn_linear.1} parent=0 // pred_check
    _
  $region19: #{vn_linear.1} parent=0 // pred_check_branch
    %1172 = sbr.rel (0) target = $region21
  $region20: #{vn_linear.1} parent=0 // pred_region
    _
  $region21: #{vn_linear.1} parent=0 // pred_fallthru
    _

</llo_original>
